<compile_context>
chip_gen: v6e
topology: v6e:2x2x1
jax: 0.10.0
libtpu: 0.0.40
codegen_flags: <defaults>
</compile_context>

<pallas_src>
import functools

import jax
import jax.numpy as jnp
from jax import lax
from jax.experimental import pallas as pl
from jax.experimental.pallas import tpu as pltpu


def _vmem_budget_bytes():
    """~75% of this chip's physical VMEM (generation-aware), with a safe fallback."""
    try:
        cap = pltpu.get_tpu_info().vmem_capacity_bytes
    except Exception:
        cap = 64 << 20  # conservative: v7x per-TC physical VMEM
    return int(0.75 * cap)


def _make_kernel(in_dim, tk, use_scratch):
    """Build the matmul kernel; `in_dim`/`tk`/`use_scratch` are static."""
    ragged_k = (in_dim % tk) != 0  # static: only emit mask code when needed

    def kernel(x_ref, w_ref, b_ref, o_ref, *scratch):
        # x_ref : (tm, tk)  input rows tile
        # w_ref : (tn, tk)  weight tile in PyTorch (out, in) layout
        # b_ref : (1,  tn)  bias tile
        # o_ref : (tm, tn)  output tile (resident across the K axis)
        # scratch[0] (optional): (tm, tn) f32 accumulator
        acc_ref = scratch[0] if use_scratch else o_ref
        k = pl.program_id(2)

        @pl.when(k == 0)
        def _init():
            # Fold the bias into the accumulator init (saves a finalize add).
            acc_ref[...] = jnp.broadcast_to(
                b_ref[...].astype(jnp.float32), acc_ref.shape)

        x = x_ref[...]
        w = w_ref[...]
        if ragged_k:
            # Mask the K tail: zero BOTH operands beyond in_dim so undefined
            # padding (even NaN/Inf garbage) contributes exactly zero.
            valid = in_dim - k * tk
            col = lax.broadcasted_iota(jnp.int32, (1, tk), 1)
            keep = col < valid
            x = jnp.where(keep, x, jnp.zeros_like(x))
            w = jnp.where(keep, w, jnp.zeros_like(w))

        # Contract x's dim 1 with w's dim 1 -> (tm, tn); MXU matmul, f32 acc.
        acc_ref[...] += lax.dot_general(
            x, w,
            dimension_numbers=(((1,), (1,)), ((), ())),
            preferred_element_type=jnp.float32,
        )

        if use_scratch:
            @pl.when(k == pl.num_programs(2) - 1)
            def _finalize():
                o_ref[...] = acc_ref[...].astype(o_ref.dtype)

    return kernel


@functools.partial(jax.jit, static_argnames=("block_m", "block_n", "block_k"))
def linear_head(x, weight, bias, *, block_m=None, block_n=None, block_k=None):
    """y = x @ weight.T + bias, matching torch.nn.Linear(in_dim, out_dim).

    x:      (..., in_dim)
    weight: (out_dim, in_dim)   -- PyTorch layout, consumed directly (no transpose)
    bias:   (out_dim,)
    Tip: pass bf16 x/weight for large heads; accumulation is f32 in-kernel.
    """
    *lead, in_dim = x.shape
    out_dim, in_dim_w = weight.shape
    assert in_dim == in_dim_w, "weight shape must be (out_dim, in_dim)"

    x2 = x.reshape(-1, in_dim)
    m = x2.shape[0]

    itemsize = jnp.dtype(x.dtype).itemsize
    budget = _vmem_budget_bytes()

    # Generation-aware, roughly square tile defaults (dominant lever: cut
    # operand re-streaming; 1024x1024 ~= 512 FLOP/streamed-elem).
    bm = 1024 if block_m is None else block_m
    bn = 1024 if block_n is None else block_n
    bk = 1024 if block_k is None else block_k
    if (block_m is None and block_n is None and itemsize <= 2
            and budget >= (80 << 20) and m >= 1536 and out_dim >= 1536):
        # v5e/v6e (128 MiB physical VMEM) + 16-bit operands: larger square
        # tiles to clear the v6e compute-bound threshold (~656 FLOP/byte).
        bm = bn = 1536

    # Tiles clamp to the full dim when small (block dim == array dim is legal).
    tm = m if m <= bm else bm               # bm is a multiple of 8
    tn = out_dim if out_dim <= bn else bn   # bn is a multiple of 128
    tk = in_dim if in_dim <= bk else bk     # bk is a multiple of 128; tail masked

    # f32 outputs: accumulate straight into the resident output block
    # (drops the scratch accumulator and the finalize copy on the store slot).
    use_scratch = jnp.dtype(x.dtype) != jnp.dtype(jnp.float32)
    scratch_shapes = [pltpu.VMEM((tm, tn), jnp.float32)] if use_scratch else []

    grid_m = pl.cdiv(m, tm)
    grid_n = pl.cdiv(out_dim, tn)
    grid_k = pl.cdiv(in_dim, tk)

    b2 = bias.reshape(1, out_dim)  # 2D (1, out_dim): TPU-friendly layout

    # Scoped-VMEM request: actual double-buffered footprint + headroom,
    # capped at ~75% of this chip's physical VMEM (no hard-coded 64 MiB clamp).
    acc_bytes = tm * tn * 4 if use_scratch else 0
    needed = (2 * (tm * tk + tn * tk) * itemsize   # double-buffered x, weight
              + 2 * tm * tn * itemsize             # double-buffered output
              + 2 * tn * itemsize                  # bias
              + acc_bytes)
    vmem_limit = max(32 << 20, min(budget, int(1.35 * needed)))

    # Small-M (decode-style) fast path: deepen weight buffering so the weight
    # DMA stream never idles across j/k tile boundaries.
    if m <= tm and grid_n * grid_k >= 3:
        w_spec = pl.BlockSpec((tn, tk), lambda i, j, k: (j, k),
                              pipeline_mode=pl.Buffered(3))
    else:
        w_spec = pl.BlockSpec((tn, tk), lambda i, j, k: (j, k))

    cost = pl.CostEstimate(
        flops=2 * m * out_dim * in_dim,
        transcendentals=0,
        bytes_accessed=(m * in_dim * itemsize * grid_n          # x re-read per N tile
                        + out_dim * in_dim * itemsize * grid_m  # w re-read per M tile
                        + m * out_dim * itemsize                # output written once
                        + out_dim * itemsize),                  # bias
    )

    y = pl.pallas_call(
        _make_kernel(in_dim, tk, use_scratch),
        out_shape=jax.ShapeDtypeStruct((m, out_dim), x.dtype),
        grid_spec=pltpu.PrefetchScalarGridSpec(
            num_scalar_prefetch=0,
            grid=(grid_m, grid_n, grid_k),
            in_specs=[
                pl.BlockSpec((tm, tk), lambda i, j, k: (i, k)),   # x rows
                w_spec,                                           # weight (out, in)
                pl.BlockSpec((1, tn), lambda i, j, k: (0, j)),    # bias
            ],
            out_specs=pl.BlockSpec((tm, tn), lambda i, j, k: (i, j)),
            scratch_shapes=scratch_shapes,
        ),
        compiler_params=pltpu.CompilerParams(
            dimension_semantics=("parallel", "parallel", "arbitrary"),
            vmem_limit_bytes=vmem_limit,
        ),
        cost_estimate=cost,
    )(x2, weight, b2)

    return y.reshape(*lead, out_dim)


if __name__ == "__main__":
    # Small shapes consistent with the module: batch=8, in_dim=32, out_dim=16.
    batch, in_dim, out_dim = 8, 32, 16

    key = jax.random.PRNGKey(0)
    kx, kw, kb = jax.random.split(key, 3)

    # Deterministic parameter init mimicking torch.nn.Linear default
    # (uniform in [-1/sqrt(in_dim), 1/sqrt(in_dim)]).
    bound = 1.0 / (in_dim ** 0.5)
    weight = jax.random.uniform(kw, (out_dim, in_dim), jnp.float32, -bound, bound)
    bias = jax.random.uniform(kb, (out_dim,), jnp.float32, -bound, bound)
    x = jax.random.normal(kx, (batch, in_dim), jnp.float32)

    y = linear_head(x, weight, bias)
    jax.block_until_ready(y)

    # Pure-JAX reference check.
    y_ref = x @ weight.T + bias
    assert y.shape == (batch, out_dim)
    assert jnp.allclose(y, y_ref, atol=1e-5, rtol=1e-5)

    print("KERNEL_OK")
</pallas_src>

<mosaic_0001>
module attributes {stable_mosaic.version = 11 : i64} {
  func.func @kernel(%arg0: i32, %arg1: i32, %arg2: i32, %arg3: memref<8x32xf32, #tpu.memory_space<vmem>>, %arg4: memref<16x32xf32, #tpu.memory_space<vmem>>, %arg5: memref<1x16xf32, #tpu.memory_space<vmem>>, %arg6: memref<8x16xf32, #tpu.memory_space<vmem>>) attributes {dimension_semantics = [#tpu.dimension_semantics<parallel>, #tpu.dimension_semantics<parallel>, #tpu.dimension_semantics<arbitrary>], iteration_bounds = array<i64: 1, 1, 1>, scalar_prefetch = 0 : i64, scratch_operands = 0 : i64, tpu.core_type = #tpu.core_type<tc>, window_params = [{transform_indices = @transform_0, window_bounds = array<i64: 8, 32>}, {transform_indices = @transform_1, window_bounds = array<i64: 16, 32>}, {transform_indices = @transform_2, window_bounds = array<i64: 1, 16>}, {transform_indices = @transform_3, window_bounds = array<i64: 8, 16>}]} {
    %c0_i32 = arith.constant 0 : i32
    %0 = arith.cmpi eq, %arg2, %c0_i32 : i32
    %1 = arith.extui %0 : i1 to i32
    %c0_i32_0 = arith.constant 0 : i32
    %2 = arith.cmpi ne, %1, %c0_i32_0 : i32
    scf.if %2 {
      %c0_8 = arith.constant 0 : index
      %c0_9 = arith.constant 0 : index
      %9 = vector.load %arg5[%c0_8, %c0_9] : memref<1x16xf32, #tpu.memory_space<vmem>>, vector<1x16xf32>
      %10 = vector.shape_cast %9 : vector<1x16xf32> to vector<1x16xf32>
      %11 = vector.broadcast %10 : vector<1x16xf32> to vector<8x16xf32>
      %c0_10 = arith.constant 0 : index
      %c0_11 = arith.constant 0 : index
      %12 = vector.load %arg6[%c0_10, %c0_11] : memref<8x16xf32, #tpu.memory_space<vmem>>, vector<8x16xf32>
      tpu.vector_store %arg6[%c0_10, %c0_11], %11 {strides = array<i32>} : memref<8x16xf32, #tpu.memory_space<vmem>>, vector<8x16xf32>,
    } else {
    }
    %c0 = arith.constant 0 : index
    %c0_1 = arith.constant 0 : index
    %3 = vector.load %arg3[%c0, %c0_1] : memref<8x32xf32, #tpu.memory_space<vmem>>, vector<8x32xf32>
    %c0_2 = arith.constant 0 : index
    %c0_3 = arith.constant 0 : index
    %4 = vector.load %arg4[%c0_2, %c0_3] : memref<16x32xf32, #tpu.memory_space<vmem>>, vector<16x32xf32>
    %c0_4 = arith.constant 0 : index
    %c0_5 = arith.constant 0 : index
    %5 = vector.load %arg6[%c0_4, %c0_5] : memref<8x16xf32, #tpu.memory_space<vmem>>, vector<8x16xf32>
    %cst = arith.constant dense<0.000000e+00> : vector<8x16xf32>
    %6 = tpu.matmul %3, %4, %cst {dimension_numbers = #tpu.dot_dimension_numbers<[1], [1], [0], [0], [0, 0, 1, 0], [], []>} : vector<8x32xf32>, vector<16x32xf32>, vector<8x16xf32> -> vector<8x16xf32>
    %7 = arith.addf %5, %6 : vector<8x16xf32>
    %c0_6 = arith.constant 0 : index
    %c0_7 = arith.constant 0 : index
    %8 = vector.load %arg6[%c0_6, %c0_7] : memref<8x16xf32, #tpu.memory_space<vmem>>, vector<8x16xf32>
    tpu.vector_store %arg6[%c0_6, %c0_7], %7 {strides = array<i32>} : memref<8x16xf32, #tpu.memory_space<vmem>>, vector<8x16xf32>,
    return
  }
  func.func @transform_0(%arg0: i32, %arg1: i32, %arg2: i32) -> (i32, i32) {
    %c0_i32 = arith.constant 0 : i32
    return %arg0, %arg2 : i32, i32
  }
  func.func @transform_1(%arg0: i32, %arg1: i32, %arg2: i32) -> (i32, i32) {
    %c0_i32 = arith.constant 0 : i32
    return %arg1, %arg2 : i32, i32
  }
  func.func @transform_2(%arg0: i32, %arg1: i32, %arg2: i32) -> (i32, i32) {
    %c0_i32 = arith.constant 0 : i32
    %c0_i32_0 = arith.constant 0 : i32
    return %c0_i32, %arg1 : i32, i32
  }
  func.func @transform_3(%arg0: i32, %arg1: i32, %arg2: i32) -> (i32, i32) {
    %c0_i32 = arith.constant 0 : i32
    return %arg0, %arg1 : i32, i32
  }
}

</mosaic_0001>

<llo_original>
// kernel: linear_head.1
$region0: #{linear_head.1}
  #allocation0 [shape = 'u32[]', space=smem, size = 0x4, offset = 0x4, fixed_abs, tag = 'smem constant byte address 0x4 - core index']
  #allocation1 [shape = 'u32[144,128]{1,0:T(1,128)}', space=vmem, size = 0x12000, scoped, tag = 'internal scratch']
  %s0 = inlined_call_operand.hbm [shape: f32[8,32], index: 0, kind: input, shape index: {}]
  %s1 = inlined_call_operand.hbm [shape: f32[16,32], index: 1, kind: input, shape index: {}]
  %s2 = inlined_call_operand.vmem [shape: f32[1,16], index: 2, kind: input, shape index: {}]
  %s3 = inlined_call_operand.hbm [shape: f32[8,16], index: 3, kind: output, shape index: {}]
  %s4 = sld [smem:[#allocation0]]
  $region34: #{linear_head.1} parent=0
    _
  %s6 = ssub.s32 1, %s4
  %s7 = scalar_select 0, %s6, %s4
  $region1: #{linear_head.1} parent=0
    #allocation2 [shape = 'u8[4096]{0}', space=vmem, size = 0x1000, scoped, tag = 'input window, operand 0, single buffered']
    #allocation3 [shape = 's32[1]{0}', space=sflag, size = 0x4, scoped, tag = 'scoped memory for linear_head.1']
    #allocation4 [shape = 's32[1]{0}', space=sflag, size = 0x4, scoped, tag = 'scoped memory for linear_head.1']
    #allocation5 [shape = 'u8[8192]{0}', space=vmem, size = 0x2000, scoped, tag = 'input window, operand 1, single buffered']
    #allocation6 [shape = 's32[1]{0}', space=sflag, size = 0x4, scoped, tag = 'scoped memory for linear_head.1']
    #allocation7 [shape = 'u8[4096]{0}', space=vmem, size = 0x1000, scoped, tag = 'output window, operand 0, single buffered']
    %8 = vsyncpa [#allocation3], 0
    %9 = vsyncpa [#allocation6], 0
    %10 = vsyncpa [#allocation4], 0
    // Predicated region
    $region2: #{linear_head.1} parent=1 // pred_check
      _
    $region3: #{linear_head.1} parent=1 // pred_check_branch
      %12 = sbr.rel (0) target = $region5
    $region4: #{linear_head.1} parent=1 // pred_region
      %s14 = ssub.s32 128, 128
      %15 = vsyncadd [#allocation3], %s14
      %s17 = sshll.u32 [#allocation2], 4
      %s18 = int_to_ptr.vmem [resolvable:$true] %s17
      %20 = dma.hbm_to_vmem [thread:$0]  %s0, 128, %s18, [#allocation3]
    $region5: #{linear_head.1} parent=1 // pred_fallthru
      _
    // Predicated region
    $region6: #{linear_head.1} parent=1 // pred_check
      _
    $region7: #{linear_head.1} parent=1 // pred_check_branch
      %22 = sbr.rel (0) target = $region9
    $region8: #{linear_head.1} parent=1 // pred_region
      %s24 = ssub.s32 256, 256
      %25 = vsyncadd [#allocation6], %s24
      %s26 = sshll.u32 [#allocation5], 4
      %s27 = int_to_ptr.vmem [resolvable:$true] %s26
      %32 = dma.hbm_to_vmem [thread:$0]  %s1, 256, %s27, [#allocation6], 128, 128, 8
    $region9: #{linear_head.1} parent=1 // pred_fallthru
      _
    // Predicated region
    $region10: #{linear_head.1} parent=1 // pred_check
      _
    $region11: #{linear_head.1} parent=1 // pred_check_branch
      %34 = sbr.rel (0) target = $region13
    $region12: #{linear_head.1} parent=1 // pred_region
      _
    $region13: #{linear_head.1} parent=1 // pred_fallthru
      _
    // Predicated region
    $region14: #{linear_head.1} parent=1 // pred_check
      _
    $region15: #{linear_head.1} parent=1 // pred_check_branch
      %36 = sbr.rel (0) target = $region17
    $region16: #{linear_head.1} parent=1 // pred_region
      %37 = dma.done [#allocation3], 128
    $region17: #{linear_head.1} parent=1 // pred_fallthru
      _
    // Predicated region
    $region18: #{linear_head.1} parent=1 // pred_check
      _
    $region19: #{linear_head.1} parent=1 // pred_check_branch
      %39 = sbr.rel (0) target = $region21
    $region20: #{linear_head.1} parent=1 // pred_region
      %40 = dma.done [#allocation6], 256
    $region21: #{linear_head.1} parent=1 // pred_fallthru
      _
    %p41 = scmp.eq.s32.totalorder 0, 0
    // Predicated region
    $region22: #{linear_head.1} parent=1 // pred_check
      %p42 = pneg %p41
    $region23: #{linear_head.1} parent=1 // pred_check_branch
      %44 = sbr.rel (%p42) target = $region25
    $region24: #{linear_head.1} parent=1 // pred_region
      %v45 = vld [vmem:[%s2] sm:$0x1]
      %v47 = vlaneseq
      %v48 = vshrl.u32 %v47, 7
      %v49 = vsub.s32 0, %v48
      %v50 = vrot.slane %v45, %v49
      %vm52 = vcmask 130048
      %53 = vst.msk [vmem:[#allocation7] sm:$0xff] %vm52, %v50
    $region25: #{linear_head.1} parent=1 // pred_fallthru
      _
    %v54 = vld [vmem:[#allocation2] sm:$0xff]
    %v55 = vld [vmem:[#allocation5] sm:$0xff]
    %v56 = vld [vmem:[#allocation5 + $0x8] sm:$0xff]
    %v57 = vld [vmem:[#allocation7] sm:$0xff]
    %vm58 = vcmask 261120
    %v60 = vsel %vm58, %v54, 0
    %v63 = vsel %vm58, %v55, 0
    %v66 = vsel %vm58, %v56, 0
    %68 = vmatprep.subr.mxu0 0.0
    %69 = vmatpush1.xpose.msra.mxu0 0.0
    %70 = vmatprep.subr.mxu0 0.0
    %71 = vmatpush1.xpose.msra.mxu0 0.0
    %72 = vmatprep.subr.mxu0 0.0
    %73 = vmatpush1.xpose.msra.mxu0 0.0
    %74 = vmatprep.subr.mxu0 0.0
    %75 = vmatpush1.xpose.msra.mxu0 0.0
    %76 = vmatprep.subr.mxu0 0.0
    %77 = vmatpush1.xpose.msra.mxu0 0.0
    %78 = vmatprep.subr.mxu0 0.0
    %79 = vmatpush1.xpose.msra.mxu0 0.0
    %80 = vmatprep.subr.mxu0 0.0
    %81 = vmatpush1.xpose.msra.mxu0 0.0
    %82 = vmatprep.subr.mxu0 0.0
    %83 = vmatpush1.xpose.msra.mxu0 0.0
    %84 = vmatprep.subr.mxu0 0.0
    %85 = vmatpush1.xpose.msra.mxu0 0.0
    %86 = vmatprep.subr.mxu0 0.0
    %87 = vmatpush1.xpose.msra.mxu0 0.0
    %88 = vmatprep.subr.mxu0 0.0
    %89 = vmatpush1.xpose.msra.mxu0 0.0
    %90 = vmatprep.subr.mxu0 0.0
    %91 = vmatpush1.xpose.msra.mxu0 0.0
    %92 = vmatprep.subr.mxu0 0.0
    %93 = vmatpush1.xpose.msra.mxu0 0.0
    %94 = vmatprep.subr.mxu0 0.0
    %95 = vmatpush1.xpose.msra.mxu0 0.0
    %96 = vmatprep.subr.mxu0 0.0
    %97 = vmatpush1.xpose.msra.mxu0 %v66
    %98 = vmatprep.subr.mxu0 0.0
    %99 = vmatpush1.xpose.msra.mxu0 %v63
    %100 = vmatprep.subr.mxu0 0.0
    %101 = vmatpush2.xpose.msra.mxu0 0.0
    %102 = vmatprep.subr.mxu0 0.0
    %103 = vmatpush2.xpose.msra.mxu0 0.0
    %104 = vmatprep.subr.mxu0 0.0
    %105 = vmatpush2.xpose.msra.mxu0 0.0
    %106 = vmatprep.subr.mxu0 0.0
    %107 = vmatpush2.xpose.msra.mxu0 0.0
    %108 = vmatprep.subr.mxu0 0.0
    %109 = vmatpush2.xpose.msra.mxu0 0.0
    %110 = vmatprep.subr.mxu0 0.0
    %111 = vmatpush2.xpose.msra.mxu0 0.0
    %112 = vmatprep.subr.mxu0 0.0
    %113 = vmatpush2.xpose.msra.mxu0 0.0
    %114 = vmatprep.subr.mxu0 0.0
    %115 = vmatpush2.xpose.msra.mxu0 0.0
    %116 = vmatprep.subr.mxu0 0.0
    %117 = vmatpush2.xpose.msra.mxu0 0.0
    %118 = vmatprep.subr.mxu0 0.0
    %119 = vmatpush2.xpose.msra.mxu0 0.0
    %120 = vmatprep.subr.mxu0 0.0
    %121 = vmatpush2.xpose.msra.mxu0 0.0
    %122 = vmatprep.subr.mxu0 0.0
    %123 = vmatpush2.xpose.msra.mxu0 0.0
    %124 = vmatprep.subr.mxu0 0.0
    %125 = vmatpush2.xpose.msra.mxu0 0.0
    %126 = vmatprep.subr.mxu0 0.0
    %127 = vmatpush2.xpose.msra.mxu0 0.0
    %128 = vmatprep.subr.mxu0 0.0
    %129 = vmatpush2.xpose.msra.mxu0 0.0
    %130 = vmatprep.subr.mxu0 0.0
    %131 = vmatpush2.xpose.msra.mxu0 0.0
    %132 = vmatprep.mubr.f32.mxu0 0.0
    %133 = vmatmul.mubr.f32.gmra.mxu0 %v60
    %v134 = vpop.f32.mrf.mxu0
    %v135 = vadd.f32 0.0, %v134
    %v136 = vpop.f32.mrf.mxu0
    %137 = vdwg.mxu0
    %v138 = vadd.f32 %v57, %v135
    %vm139 = vcmask 130048
    %140 = vst.msk [vmem:[#allocation7] sm:$0xff] %vm139, %v138
    // Predicated region
    $region26: #{linear_head.1} parent=1 // pred_check
      _
    $region27: #{linear_head.1} parent=1 // pred_check_branch
      %142 = sbr.rel (0) target = $region29
    $region28: #{linear_head.1} parent=1 // pred_region
      %s144 = ssub.s32 128, 128
      %145 = vsyncadd [#allocation4], %s144
      %s147 = sshll.u32 [#allocation7], 4
      %s148 = int_to_ptr.vmem [resolvable:$true] %s147
      %150 = dma.vmem_to_hbm [thread:$0]  %s148, 128, %s3, [#allocation4]
    $region29: #{linear_head.1} parent=1 // pred_fallthru
      _
    // Predicated region
    $region30: #{linear_head.1} parent=1 // pred_check
      _
    $region31: #{linear_head.1} parent=1 // pred_check_branch
      %152 = sbr.rel (0) target = $region33
    $region32: #{linear_head.1} parent=1 // pred_region
      %153 = dma.done [#allocation4], 128
    $region33: #{linear_head.1} parent=1 // pred_fallthru
      _
    %154 = vsyncpa [#allocation3], 1
    %155 = vsyncpa [#allocation6], 1
    %156 = vsyncpa [#allocation4], 1

</llo_original>
